<compile_context>
chip_gen: v7x
topology: tpu7x:2x2x1
jax: 0.10.0
libtpu: 0.0.40
codegen_flags: <defaults>
</compile_context>

<pallas_src>
import functools

import jax
import jax.numpy as jnp
from jax import lax
from jax.experimental import pallas as pl
from jax.experimental.pallas import tpu as pltpu


_PAD_SMALL_N = 512  # below this, padding the adjacency costs ~nothing


def _round_up(x, m):
    return (x + m - 1) // m * m


def _cdiv(a, b):
    return (a + b - 1) // b


def _vmem_limit_bytes():
    """Scoped-VMEM limit with headroom for compiler-internal scratch."""
    try:
        cap = int(pltpu.get_tpu_info().vmem_capacity_bytes)
    except Exception:  # conservative fallback if the query is unavailable
        cap = 64 * 1024 * 1024
    # 3/4 of physical, capped at 96 MiB: ~96 MiB on v5e/v6e (128 MiB VMEM),
    # ~48 MiB on v7x (64 MiB VMEM per TensorCore).
    return max(32 * 1024 * 1024, min(cap * 3 // 4, 96 * 1024 * 1024))


# ---------------------------------------------------------------------------
# Kernel A: single-pass row-stripe softmax (small graphs, padded adjacency).
# ---------------------------------------------------------------------------
def _gcn_single_pass_kernel(adj_ref, xw_ref, b_ref, o_ref):
    """adj_ref: [tm, cols_al] (padded cols = -1e30)   xw_ref: [cols_al, f_pad]
       b_ref: [1, f_pad]                              o_ref : [tm, f_pad]"""
    a = adj_ref[...].astype(jnp.float32)
    m = jnp.max(a, axis=1, keepdims=True)
    p = jnp.exp(a - m)                                   # padded cols -> 0
    l = jnp.sum(p, axis=1, keepdims=True)
    acc = jnp.dot(p.astype(xw_ref.dtype), xw_ref[...],
                  preferred_element_type=jnp.float32)    # MXU, bf16 operands
    h = acc * pl.reciprocal(l, approx=True) + b_ref[...]
    o_ref[...] = jnp.maximum(h, 0.0).astype(o_ref.dtype)


# ---------------------------------------------------------------------------
# Kernel B: flash-style online softmax over raw adjacency (large graphs).
# ---------------------------------------------------------------------------
def _gcn_online_kernel(adj_ref, xw_ref, b_ref, o_ref, m_sc, l_sc, acc_sc,
                       *, n, mask_cols, xw_resident):
    """adj_ref: [tm, tk] raw adjacency tile (ragged edge tiles masked here)
       xw_ref : [grid_k, tk, f_pad] (resident) or [tk, f_pad] (streamed), bf16
       b_ref  : [1, f_pad]       o_ref: [tm, f_pad] (written at last k step)
       m_sc/l_sc: [tm, 1] f32    acc_sc: [tm, f_pad] f32"""
    k = pl.program_id(1)

    @pl.when(k == 0)
    def _init():
        m_sc[...] = jnp.full_like(m_sc, -jnp.inf)
        l_sc[...] = jnp.zeros_like(l_sc)
        acc_sc[...] = jnp.zeros_like(acc_sc)

    a = adj_ref[...].astype(jnp.float32)                      # [tm, tk]
    if mask_cols:
        # Only the last column tile is ragged; -1e30 -> exp underflows to 0,
        # so out-of-range columns get exactly zero softmax weight.
        col = k * a.shape[1] + lax.broadcasted_iota(jnp.int32, a.shape, 1)
        a = jnp.where(col < n, a, jnp.float32(-1e30))

    m_prev = m_sc[...]
    m_new = jnp.maximum(m_prev, jnp.max(a, axis=1, keepdims=True))
    alpha = jnp.exp(m_prev - m_new)
    p = jnp.exp(a - m_new)
    l_sc[...] = alpha * l_sc[...] + jnp.sum(p, axis=1, keepdims=True)

    if xw_resident:
        xw_blk = xw_ref[k]            # [tk, f_pad], resident XW, DMA'd once
    else:
        xw_blk = xw_ref[...]          # [tk, f_pad], streamed per column step

    acc_sc[...] = alpha * acc_sc[...] + jnp.dot(
        p.astype(xw_blk.dtype), xw_blk, preferred_element_type=jnp.float32)
    m_sc[...] = m_new

    @pl.when(k == pl.num_programs(1) - 1)
    def _finalize():
        inv_l = pl.reciprocal(l_sc[...], approx=True)         # EUP, ~free
        h = acc_sc[...] * inv_l + b_ref[...]
        o_ref[...] = jnp.maximum(h, 0.0).astype(o_ref.dtype)


# ---------------------------------------------------------------------------
# Wrapper
# ---------------------------------------------------------------------------
@functools.partial(jax.jit,
                   static_argnames=("block_m", "block_k", "xw_resident"))
def graph_conv_layer(adjacency_matrix, node_features, weight, bias, *,
                     block_m=512, block_k=1024, xw_resident=None):
    """adjacency_matrix: [N, N], node_features: [N, F_in],
       weight: [F_out, F_in] (nn.Linear.weight), bias: [F_out] -> [N, F_out]."""
    n = adjacency_matrix.shape[0]
    assert adjacency_matrix.shape == (n, n)
    f_out, f_in = weight.shape
    assert node_features.shape == (n, f_in)
    assert bias.shape == (f_out,)
    assert block_m % 8 == 0 and block_k % 128 == 0

    out_dtype = node_features.dtype
    adj_bytes = jnp.dtype(adjacency_matrix.dtype).itemsize
    out_bytes = jnp.dtype(out_dtype).itemsize

    # Prologue: XW = X @ W^T once, on the MXU in bf16 (the result is streamed
    # to the kernel as bf16 anyway, so an f32 multi-pass matmul buys nothing).
    xw = jnp.dot(node_features.astype(jnp.bfloat16),
                 weight.astype(jnp.bfloat16).T,
                 preferred_element_type=jnp.float32).astype(jnp.bfloat16)

    f_pad = _round_up(f_out, 128)                 # lane-dense output stores
    bias_p = jnp.zeros((1, f_pad), jnp.float32)
    bias_p = bias_p.at[0, :f_out].set(bias.astype(jnp.float32))

    # Row tiling (shared): keep >= 2 row tiles when possible so the
    # "parallel" axis feeds both TensorCores on v7x.
    rows_al = _round_up(n, 8)
    tm = min(block_m, rows_al)
    if rows_al > 8 and _cdiv(rows_al, tm) < 2:
        tm = _round_up(_cdiv(rows_al, 2), 8)
    rows_pad = _round_up(n, tm)
    grid_rows = rows_pad // tm

    vmem_limit = _vmem_limit_bytes()
    out_shape = jax.ShapeDtypeStruct((rows_pad, f_pad), out_dtype)

    if n <= _PAD_SMALL_N:
        # ---- Small graphs: the adjacency pad is negligible (<~1 MB), and the
        # whole softmax row fits VMEM -> single-pass kernel, no online carries.
        cols_al = _round_up(n, 128)
        adj_p = jnp.full((rows_pad, cols_al), -1e30, adjacency_matrix.dtype)
        adj_p = adj_p.at[:n, :n].set(adjacency_matrix)
        xw_p = jnp.pad(xw, ((0, cols_al - n), (0, f_pad - f_out)))

        out_p = pl.pallas_call(
            _gcn_single_pass_kernel,
            out_shape=out_shape,
            grid_spec=pltpu.PrefetchScalarGridSpec(
                num_scalar_prefetch=0,
                grid=(grid_rows,),
                in_specs=[
                    pl.BlockSpec((tm, cols_al), lambda i: (i, 0)),   # A stripe
                    pl.BlockSpec((cols_al, f_pad), lambda i: (0, 0)),  # XW res.
                    pl.BlockSpec((1, f_pad), lambda i: (0, 0)),        # bias
                ],
                out_specs=pl.BlockSpec((tm, f_pad), lambda i: (i, 0)),
            ),
            compiler_params=pltpu.CompilerParams(
                dimension_semantics=("parallel",),
                vmem_limit_bytes=vmem_limit,
            ),
        )(adj_p, xw_p, bias_p)
    else:
        # ---- Large graphs: stream the adjacency RAW (no pad/cast pass over
        # O(N^2) data); ragged edge tiles are masked inside the kernel.
        tk = min(block_k, (n // 128) * 128)       # 128-aligned, <= n
        grid_k = _cdiv(n, tk)
        n_k_pad = grid_k * tk
        mask_cols = (n % tk) != 0

        budget = int(vmem_limit * 0.6)
        tile_cost = (tm * tk * adj_bytes * 2        # adjacency double-buffer
                     + 2 * tm * tk * 4              # f32 exp temporaries
                     + tm * f_pad * 4               # f32 accumulator scratch
                     + tm * f_pad * out_bytes * 2   # output double-buffer
                     + (1 << 20))                   # slack
        if xw_resident is None:
            xw_resident = tile_cost + n_k_pad * f_pad * 2 * 2 <= budget

        # XW zero-padded to the column-grid coverage (cheap, O(N*F)) so no
        # kernel-side read can touch unspecified data on the contraction dim.
        xw_p = jnp.pad(xw, ((0, n_k_pad - n), (0, f_pad - f_out)))
        if xw_resident:
            xw_p = xw_p.reshape(grid_k, tk, f_pad)
            xw_spec = pl.BlockSpec((grid_k, tk, f_pad), lambda i, k: (0, 0, 0))
        else:
            xw_spec = pl.BlockSpec((tk, f_pad), lambda i, k: (k, 0))

        kernel = functools.partial(_gcn_online_kernel, n=n,
                                   mask_cols=mask_cols,
                                   xw_resident=xw_resident)
        out_p = pl.pallas_call(
            kernel,
            out_shape=out_shape,
            grid_spec=pltpu.PrefetchScalarGridSpec(
                num_scalar_prefetch=0,
                grid=(grid_rows, grid_k),
                in_specs=[
                    pl.BlockSpec((tm, tk), lambda i, k: (i, k)),    # raw A tile
                    xw_spec,
                    pl.BlockSpec((1, f_pad), lambda i, k: (0, 0)),  # bias
                ],
                out_specs=pl.BlockSpec((tm, f_pad), lambda i, k: (i, 0)),
                scratch_shapes=[
                    pltpu.VMEM((tm, 1), jnp.float32),      # running max
                    pltpu.VMEM((tm, 1), jnp.float32),      # running sum
                    pltpu.VMEM((tm, f_pad), jnp.float32),  # accumulator
                ],
            ),
            compiler_params=pltpu.CompilerParams(
                dimension_semantics=("parallel", "arbitrary"),
                vmem_limit_bytes=vmem_limit,
            ),
        )(adjacency_matrix, xw_p, bias_p)

    return out_p[:n, :f_out]


# ---------------------------------------------------------------------------
# Reference + test
# ---------------------------------------------------------------------------
def _reference(adjacency_matrix, node_features, weight, bias):
    p = jax.nn.softmax(adjacency_matrix.astype(jnp.float32), axis=1)
    h = (p @ node_features.astype(jnp.float32)) @ weight.astype(jnp.float32).T
    return jnp.maximum(h + bias.astype(jnp.float32), 0.0)


def _make_inputs(key, n, f_in, f_out):
    k_adj, k_x, k_w, k_b = jax.random.split(key, 4)
    adj = jax.random.normal(k_adj, (n, n), dtype=jnp.float32)
    x = jax.random.normal(k_x, (n, f_in), dtype=jnp.float32)
    bound = 1.0 / jnp.sqrt(jnp.float32(f_in))
    w = jax.random.uniform(k_w, (f_out, f_in), jnp.float32, -bound, bound)
    b = jax.random.uniform(k_b, (f_out,), jnp.float32, -bound, bound)
    return adj, x, w, b


if __name__ == "__main__":
    key = jax.random.PRNGKey(0)
    k1, k2, k3 = jax.random.split(key, 3)

    # Case 1: tiny graph (module's natural demo shape) -> single-pass path.
    adj, x, w, b = _make_inputs(k1, 8, 32, 32)
    out = jax.block_until_ready(graph_conv_layer(adj, x, w, b))
    ref = _reference(adj, x, w, b)
    assert out.shape == (8, 32)
    assert jnp.allclose(out, ref, atol=2e-2, rtol=2e-2), "mismatch (case 1)"

    # Case 2: non-aligned medium graph -> single-pass path, 2 row tiles
    # (exercises the megacore row split and feature-dim pad/slice).
    adj2, x2, w2, b2 = _make_inputs(k2, 300, 64, 48)
    out2 = jax.block_until_ready(graph_conv_layer(adj2, x2, w2, b2))
    ref2 = _reference(adj2, x2, w2, b2)
    assert out2.shape == (300, 48)
    assert jnp.allclose(out2, ref2, atol=2e-2, rtol=2e-2), "mismatch (case 2)"

    # Case 3: larger graph -> raw-adjacency online-softmax path (ragged column
    # tile masked in-kernel), VMEM-resident XW.
    adj3, x3, w3, b3 = _make_inputs(k3, 640, 64, 48)
    ref3 = _reference(adj3, x3, w3, b3)
    out3 = jax.block_until_ready(
        graph_conv_layer(adj3, x3, w3, b3, block_m=128, block_k=256))
    assert out3.shape == (640, 48)
    assert jnp.allclose(out3, ref3, atol=2e-2, rtol=2e-2), "mismatch (case 3)"

    # Case 4: same graph, streamed (non-resident) XW fallback path.
    out4 = jax.block_until_ready(
        graph_conv_layer(adj3, x3, w3, b3, block_m=128, block_k=256,
                         xw_resident=False))
    assert jnp.allclose(out4, ref3, atol=2e-2, rtol=2e-2), "mismatch (case 4)"

    print("KERNEL_OK")
</pallas_src>

<mosaic_0001>
module attributes {stable_mosaic.version = 11 : i64} {
  func.func @_gcn_single_pass_kernel(%arg0: i32, %arg1: memref<8x128xf32, #tpu.memory_space<vmem>>, %arg2: memref<128x128xbf16, #tpu.memory_space<vmem>>, %arg3: memref<1x128xf32, #tpu.memory_space<vmem>>, %arg4: memref<8x128xf32, #tpu.memory_space<vmem>>) attributes {dimension_semantics = [#tpu.dimension_semantics<parallel>], iteration_bounds = array<i64: 1>, scalar_prefetch = 0 : i64, scratch_operands = 0 : i64, tpu.core_type = #tpu.core_type<tc>, window_params = [{transform_indices = @transform_0, window_bounds = array<i64: 8, 128>}, {pipeline_mode = #tpu.pipeline_mode<synchronous>, transform_indices = @transform_1, window_bounds = array<i64: 128, 128>}, {pipeline_mode = #tpu.pipeline_mode<synchronous>, transform_indices = @transform_2, window_bounds = array<i64: 1, 128>}, {transform_indices = @transform_3, window_bounds = array<i64: 8, 128>}]} {
    %c0 = arith.constant 0 : index
    %c0_0 = arith.constant 0 : index
    %0 = vector.load %arg1[%c0, %c0_0] : memref<8x128xf32, #tpu.memory_space<vmem>>, vector<8x128xf32>
    %cst = arith.constant dense<0xFF800000> : vector<8xf32>
    %1 = vector.multi_reduction <maximumf>, %0, %cst [1] : vector<8x128xf32> to vector<8xf32>
    %2 = vector.shape_cast %1 : vector<8xf32> to vector<8x1xf32>
    %3 = vector.broadcast %2 : vector<8x1xf32> to vector<8x128xf32>
    %4 = arith.subf %0, %3 : vector<8x128xf32>
    %5 = math.exp %4 : vector<8x128xf32>
    %cst_1 = arith.constant dense<0.000000e+00> : vector<8xf32>
    %6 = vector.multi_reduction <add>, %5, %cst_1 [1] : vector<8x128xf32> to vector<8xf32>
    %7 = vector.shape_cast %6 : vector<8xf32> to vector<8x1xf32>
    %8 = arith.truncf %5 : vector<8x128xf32> to vector<8x128xbf16>
    %c0_2 = arith.constant 0 : index
    %c0_3 = arith.constant 0 : index
    %9 = vector.load %arg2[%c0_2, %c0_3] : memref<128x128xbf16, #tpu.memory_space<vmem>>, vector<128x128xbf16>
    %cst_4 = arith.constant dense<0.000000e+00> : vector<8x128xf32>
    %10 = tpu.matmul %8, %9, %cst_4 {dimension_numbers = #tpu.dot_dimension_numbers<[1], [0], [0], [1], [0, 0, 1, 1], [], []>} : vector<8x128xbf16>, vector<128x128xbf16>, vector<8x128xf32> -> vector<8x128xf32>
    %11 = tpu.reciprocal %7 {approx = true} : vector<8x1xf32> -> vector<8x1xf32>
    %12 = vector.broadcast %11 : vector<8x1xf32> to vector<8x128xf32>
    %13 = arith.mulf %10, %12 : vector<8x128xf32>
    %c0_5 = arith.constant 0 : index
    %c0_6 = arith.constant 0 : index
    %14 = vector.load %arg3[%c0_5, %c0_6] : memref<1x128xf32, #tpu.memory_space<vmem>>, vector<1x128xf32>
    %15 = vector.broadcast %14 : vector<1x128xf32> to vector<8x128xf32>
    %16 = arith.addf %13, %15 : vector<8x128xf32>
    %cst_7 = arith.constant 0.000000e+00 : f32
    %17 = vector.broadcast %cst_7 : f32 to vector<8x128xf32>
    %18 = arith.maximumf %16, %17 : vector<8x128xf32>
    %c0_8 = arith.constant 0 : index
    %c0_9 = arith.constant 0 : index
    %19 = vector.load %arg4[%c0_8, %c0_9] : memref<8x128xf32, #tpu.memory_space<vmem>>, vector<8x128xf32>
    tpu.vector_store %arg4[%c0_8, %c0_9], %18 {strides = array<i32>} : memref<8x128xf32, #tpu.memory_space<vmem>>, vector<8x128xf32>,
    return
  }
  func.func @transform_0(%arg0: i32) -> (i32, i32) {
    %c0_i32 = arith.constant 0 : i32
    %c0_i32_0 = arith.constant 0 : i32
    return %arg0, %c0_i32 : i32, i32
  }
  func.func @transform_1(%arg0: i32) -> (i32, i32) {
    %c0_i32 = arith.constant 0 : i32
    %c0_i32_0 = arith.constant 0 : i32
    %c0_i32_1 = arith.constant 0 : i32
    return %c0_i32, %c0_i32_0 : i32, i32
  }
  func.func @transform_2(%arg0: i32) -> (i32, i32) {
    %c0_i32 = arith.constant 0 : i32
    %c0_i32_0 = arith.constant 0 : i32
    %c0_i32_1 = arith.constant 0 : i32
    return %c0_i32, %c0_i32_0 : i32, i32
  }
  func.func @transform_3(%arg0: i32) -> (i32, i32) {
    %c0_i32 = arith.constant 0 : i32
    %c0_i32_0 = arith.constant 0 : i32
    return %arg0, %c0_i32 : i32, i32
  }
}

</mosaic_0001>

<llo_original>
// kernel: graph_conv_layer.1
$region0: #{graph_conv_layer.1}
  #allocation0 [shape = 'u32[]', space=smem, size = 0x4, offset = 0x4, fixed_abs, tag = 'smem constant byte address 0x4 - core index']
  #allocation1 [shape = 'u32[144,128]{1,0:T(1,128)}', space=vmem, size = 0x12000, scoped, tag = 'internal scratch']
  %s0 = inlined_call_operand.vmem [shape: f32[8,128], index: 0, kind: input, shape index: {}]
  %s1 = inlined_call_operand.vmem [shape: bf16[128,128], index: 1, kind: input, shape index: {}]
  %s2 = inlined_call_operand.vmem [shape: f32[1,128], index: 2, kind: input, shape index: {}]
  %s3 = inlined_call_operand.hbm [shape: f32[8,128], index: 3, kind: output, shape index: {}]
  %s4 = sld [smem:[#allocation0]]
  $region22: #{graph_conv_layer.1} parent=0
    _
  %s6 = ssub.s32 1, %s4
  %s7 = scalar_select 0, %s6, %s4
  $region1: #{graph_conv_layer.1} parent=0
    #allocation2 [shape = 'u8[4096]{0}', space=vmem, size = 0x1000, scoped, tag = 'output window, operand 0, single buffered']
    #allocation3 [shape = 's32[1]{0}', space=sflag, size = 0x4, scoped, tag = 'scoped memory for graph_conv_layer.1']
    %8 = vsyncpa [#allocation3], 0
    // Predicated region
    $region2: #{graph_conv_layer.1} parent=1 // pred_check
      _
    $region3: #{graph_conv_layer.1} parent=1 // pred_check_branch
      %10 = sbr.rel (0) target = $region5
    $region4: #{graph_conv_layer.1} parent=1 // pred_region
      _
    $region5: #{graph_conv_layer.1} parent=1 // pred_fallthru
      _
    // Predicated region
    $region6: #{graph_conv_layer.1} parent=1 // pred_check
      _
    $region7: #{graph_conv_layer.1} parent=1 // pred_check_branch
      %12 = sbr.rel (0) target = $region9
    $region8: #{graph_conv_layer.1} parent=1 // pred_region
      _
    $region9: #{graph_conv_layer.1} parent=1 // pred_fallthru
      _
    // Predicated region
    $region10: #{graph_conv_layer.1} parent=1 // pred_check
      _
    $region11: #{graph_conv_layer.1} parent=1 // pred_check_branch
      %14 = sbr.rel (0) target = $region13
    $region12: #{graph_conv_layer.1} parent=1 // pred_region
      _
    $region13: #{graph_conv_layer.1} parent=1 // pred_fallthru
      _
    %v16 = vld [vmem:[%s0] sm:$0xff]
    %17 = vmax.xlane.f32.xlu0 %v16
    %v18 = vpop.xlane.xlu0 %17
    %v19 = vsub.f32 %v16, %v18
    %v20 = vmul.f32 %v19, 1.442695
    %v21 = vpow.pop %v20
    %22 = vadd.xlane.f32.xlu0 %v21
    %v23 = vpop.xlane.xlu0 %22
    %v24 = vpack.c.bf16 %v21, %v21
    %v25 = vld [vmem:[%s1] sm:$0xf]
    %v26 = vld [vmem:[%s1 + $0x4] sm:$0xf]
    %v27 = vld [vmem:[%s1 + $0x8] sm:$0xf]
    %v28 = vld [vmem:[%s1 + $0xc] sm:$0xf]
    %v29 = vld [vmem:[%s1 + $0x10] sm:$0xf]
    %v30 = vld [vmem:[%s1 + $0x14] sm:$0xf]
    %v31 = vld [vmem:[%s1 + $0x18] sm:$0xf]
    %v32 = vld [vmem:[%s1 + $0x1c] sm:$0xf]
    %v33 = vld [vmem:[%s1 + $0x20] sm:$0xf]
    %v34 = vld [vmem:[%s1 + $0x24] sm:$0xf]
    %v35 = vld [vmem:[%s1 + $0x28] sm:$0xf]
    %v36 = vld [vmem:[%s1 + $0x2c] sm:$0xf]
    %v37 = vld [vmem:[%s1 + $0x30] sm:$0xf]
    %v38 = vld [vmem:[%s1 + $0x34] sm:$0xf]
    %v39 = vld [vmem:[%s1 + $0x38] sm:$0xf]
    %v40 = vld [vmem:[%s1 + $0x3c] sm:$0xf]
    %v57 = vunpack.c.l.b16 %v25
    %v58 = vunpack.c.l.b16 %v26
    %v59 = vunpack.c.l.b16 %v27
    %v60 = vunpack.c.l.b16 %v28
    %v61 = vunpack.c.l.b16 %v29
    %v62 = vunpack.c.l.b16 %v30
    %v63 = vunpack.c.l.b16 %v31
    %v64 = vunpack.c.l.b16 %v32
    %v65 = vunpack.c.l.b16 %v33
    %v66 = vunpack.c.l.b16 %v34
    %v67 = vunpack.c.l.b16 %v35
    %v68 = vunpack.c.l.b16 %v36
    %v69 = vunpack.c.l.b16 %v37
    %v70 = vunpack.c.l.b16 %v38
    %v71 = vunpack.c.l.b16 %v39
    %v72 = vunpack.c.l.b16 %v40
    %v73 = vpack.c.b16 %v58, %v57
    %v74 = vpack.c.b16 %v60, %v59
    %v75 = vpack.c.b16 %v62, %v61
    %v76 = vpack.c.b16 %v64, %v63
    %v77 = vpack.c.b16 %v66, %v65
    %v78 = vpack.c.b16 %v68, %v67
    %v79 = vpack.c.b16 %v70, %v69
    %v80 = vpack.c.b16 %v72, %v71
    %89 = vmatprep.subr.bf16.mxu0 0
    %90 = vmatpush1.bf16.msra.mxu0 %v73
    %91 = vmatprep.subr.bf16.mxu0 0
    %92 = vmatpush1.bf16.msra.mxu0 %v74
    %93 = vmatprep.subr.bf16.mxu0 0
    %94 = vmatpush1.bf16.msra.mxu0 %v75
    %95 = vmatprep.subr.bf16.mxu0 0
    %96 = vmatpush1.bf16.msra.mxu0 %v76
    %97 = vmatprep.subr.bf16.mxu0 0
    %98 = vmatpush1.bf16.msra.mxu0 %v77
    %99 = vmatprep.subr.bf16.mxu0 0
    %100 = vmatpush1.bf16.msra.mxu0 %v78
    %101 = vmatprep.subr.bf16.mxu0 0
    %102 = vmatpush1.bf16.msra.mxu0 %v79
    %103 = vmatprep.subr.bf16.mxu0 0
    %104 = vmatpush1.bf16.msra.mxu0 %v80
    %105 = vmatprep.subr.bf16.mxu0 0
    %106 = vmatpush1.bf16.msra.mxu0 0
    %107 = vmatprep.subr.bf16.mxu0 0
    %108 = vmatpush1.bf16.msra.mxu0 0
    %109 = vmatprep.subr.bf16.mxu0 0
    %110 = vmatpush1.bf16.msra.mxu0 0
    %111 = vmatprep.subr.bf16.mxu0 0
    %112 = vmatpush1.bf16.msra.mxu0 0
    %113 = vmatprep.subr.bf16.mxu0 0
    %114 = vmatpush1.bf16.msra.mxu0 0
    %115 = vmatprep.subr.bf16.mxu0 0
    %116 = vmatpush1.bf16.msra.mxu0 0
    %117 = vmatprep.subr.bf16.mxu0 0
    %118 = vmatpush1.bf16.msra.mxu0 0
    %119 = vmatprep.subr.bf16.mxu0 0
    %120 = vmatpush1.bf16.msra.mxu0 0
    %121 = vmatprep.mubr.bf16.mxu0 0
    %122 = vmatmul.mubr.bf16.gmra.mrb[0].mxu0 %v24
    %v123 = vpop.f32.mrb[0].mxu0
    %v124 = vadd.f32 0.0, %v123
    %v125 = vpop.f32.mrb[0].mxu0
    %v126 = vpop.f32.mrb[0].mxu0
    %v127 = vpop.f32.mrb[0].mxu0
    %128 = vdwg.mxu0
    %v129 = vrcp.pop %v23
    %v130 = vmul.f32 %v124, %v129
    %v131 = vld [vmem:[%s2] sm:$0x1]
    %v133 = vlaneseq
    %v134 = vshrl.u32 %v133, 7
    %v135 = vsub.s32 0, %v134
    %v136 = vrot.slane %v131, %v135
    %v138 = vadd.f32 %v130, %v136
    %v139 = vmax.f32 %v138, 0.0
    %140 = vst [vmem:[#allocation2] sm:$0xff] %v139
    // Predicated region
    $region14: #{graph_conv_layer.1} parent=1 // pred_check
      _
    $region15: #{graph_conv_layer.1} parent=1 // pred_check_branch
      %142 = sbr.rel (0) target = $region17
    $region16: #{graph_conv_layer.1} parent=1 // pred_region
      %s144 = ssub.s32 128, 128
      %145 = vsyncadd [#allocation3], %s144
      %s147 = sshll.u32 [#allocation2], 4
      %s148 = int_to_ptr.vmem [resolvable:$true] %s147
      %150 = dma.vmem_to_hbm [thread:$0]  %s148, 128, %s3, [#allocation3]
    $region17: #{graph_conv_layer.1} parent=1 // pred_fallthru
      _
    // Predicated region
    $region18: #{graph_conv_layer.1} parent=1 // pred_check
      _
    $region19: #{graph_conv_layer.1} parent=1 // pred_check_branch
      %152 = sbr.rel (0) target = $region21
    $region20: #{graph_conv_layer.1} parent=1 // pred_region
      %153 = dma.done [#allocation3], 128
    $region21: #{graph_conv_layer.1} parent=1 // pred_fallthru
      _
    %154 = vsyncpa [#allocation3], 1

</llo_original>
